<compile_context>
chip_gen: v5e
topology: v5e:2x2
jax: 0.10.0
libtpu: 0.0.40
codegen_flags: <defaults>
</compile_context>

<pallas_src>
import functools

import jax
import jax.numpy as jnp
from jax.experimental import pallas as pl
from jax.experimental.pallas import tpu as pltpu

LANE = 128


def _round_up(x, m):
    return ((x + m - 1) // m) * m


def iris_mlp_kernel(x_ref, w1_ref, b1_ref, w2_ref, b2_ref, o_ref, *,
                    in_features, out_features):
    # x_ref : [TB, F]     activations, streamed per batch tile
    # w1_ref: [F, HP]     fc1 weight, hidden zero-padded to HP = 128, f32
    # b1_ref: [1, HP]     f32
    # w2_ref: [HP, OP]    fc2 weight, output zero-padded to OP = 128 (bf16 or f32)
    # b2_ref: [1, OP]     f32
    # o_ref : [TB, O]     true-width output block (masked vst; store slot has slack)
    x = x_ref[...].astype(jnp.float32)

    # ---- fc1: contraction depth F is tiny -> unrolled VPU broadcast FMAs. ----
    h = x[:, 0:1] * w1_ref[0:1, :]                       # [TB, HP] f32
    for k in range(1, in_features):                      # static unroll
        h = h + x[:, k:k + 1] * w1_ref[k:k + 1, :]
    h = jnp.maximum(h + b1_ref[...], 0.0)                # ReLU, f32
    # Padded hidden lanes are exactly 0 (zero weights + zero bias -> relu(0)).

    # ---- fc2: lane-dense [TB,128] @ [128,128] on the MXU, f32 accumulate. ----
    y = jnp.dot(h.astype(w2_ref.dtype), w2_ref[...],
                preferred_element_type=jnp.float32)      # [TB, OP] f32
    y = y + b2_ref[...]
    o_ref[...] = y[:, :out_features].astype(o_ref.dtype)


def prepare_params(w1, b1, w2, b2, *, param_dtype=jnp.float32,
                   fc2_dtype=jnp.bfloat16):
    """One-time parameter prep (hoisted out of the hot path).

    PyTorch layout in: w1 [H, F], b1 [H], w2 [O, H], b2 [O].
    Returns transposed + lane-padded params in the dtypes the kernel uses:
      w1p [F, HP] f32, b1p [1, HP] f32, w2p [HP, OP] fc2_dtype, b2p [1, OP] f32.
    """
    H, F = w1.shape
    O = w2.shape[0]
    HP = _round_up(H, LANE)
    OP = _round_up(O, LANE)
    w1p = jnp.zeros((F, HP), param_dtype).at[:, :H].set(w1.T.astype(param_dtype))
    b1p = jnp.zeros((1, HP), param_dtype).at[:, :H].set(b1.astype(param_dtype))
    w2p = jnp.zeros((HP, OP), fc2_dtype).at[:H, :O].set(w2.T.astype(fc2_dtype))
    b2p = jnp.zeros((1, OP), param_dtype).at[:, :O].set(b2.astype(param_dtype))
    return w1p, b1p, w2p, b2p, O


@functools.partial(jax.jit, static_argnames=("out_features", "block_b"))
def iris_forward_prepared(x, w1p, b1p, w2p, b2p, *, out_features, block_b=4096):
    """Forward pass with pre-prepared params. x: [B, F] -> [B, O]."""
    B, F = x.shape
    HP = w1p.shape[1]
    OP = w2p.shape[1]

    # Batch tile: multiple of 8 sublanes; no explicit batch padding (Pallas
    # masks the ragged last block).
    TB = max(8, _round_up(min(block_b, B), 8))
    # v7x megacore: keep >=2 grid steps for large batches so the "parallel"
    # axis shards across both TensorCores.
    if B >= 2048 and pl.cdiv(B, TB) < 2:
        TB = _round_up(pl.cdiv(B, 2), 8)

    grid = (pl.cdiv(B, TB),)
    kernel = functools.partial(iris_mlp_kernel,
                               in_features=F, out_features=out_features)

    return pl.pallas_call(
        kernel,
        out_shape=jax.ShapeDtypeStruct((B, out_features), x.dtype),
        grid=grid,
        in_specs=[
            pl.BlockSpec((TB, F), lambda i: (i, 0)),    # activation stream
            pl.BlockSpec((F, HP), lambda i: (0, 0)),    # weights resident in VMEM
            pl.BlockSpec((1, HP), lambda i: (0, 0)),
            pl.BlockSpec((HP, OP), lambda i: (0, 0)),
            pl.BlockSpec((1, OP), lambda i: (0, 0)),
        ],
        out_specs=pl.BlockSpec((TB, out_features), lambda i: (i, 0)),
        compiler_params=pltpu.CompilerParams(
            dimension_semantics=("parallel",),          # both TCs on v7x
        ),
    )(x, w1p, b1p, w2p, b2p)


def iris_forward(x, w1, b1, w2, b2, *, block_b=4096, fc2_dtype=jnp.bfloat16):
    """Convenience wrapper taking raw PyTorch-layout params (prep done here)."""
    w1p, b1p, w2p, b2p, O = prepare_params(w1, b1, w2, b2, fc2_dtype=fc2_dtype)
    return iris_forward_prepared(x, w1p, b1p, w2p, b2p,
                                 out_features=O, block_b=block_b)


def _reference(x, w1, b1, w2, b2):
    h = jnp.maximum(x @ w1.T + b1, 0.0)
    return h @ w2.T + b2


if __name__ == "__main__":
    # Iris-like sizes: 4 input features, 32 hidden, 3 output classes.
    # batch=100 with block_b=32 exercises a 4-step grid with a ragged last block.
    input_size, hidden_size, output_size, batch = 4, 32, 3, 100

    key = jax.random.PRNGKey(0)
    kx, k1, k2, k3, k4 = jax.random.split(key, 5)

    x = jax.random.normal(kx, (batch, input_size), dtype=jnp.float32)

    # Deterministic init mimicking PyTorch Linear default (uniform +/- 1/sqrt(fan_in)).
    bound1 = 1.0 / (input_size ** 0.5)
    bound2 = 1.0 / (hidden_size ** 0.5)
    w1 = jax.random.uniform(k1, (hidden_size, input_size), jnp.float32, -bound1, bound1)
    b1 = jax.random.uniform(k2, (hidden_size,), jnp.float32, -bound1, bound1)
    w2 = jax.random.uniform(k3, (output_size, hidden_size), jnp.float32, -bound2, bound2)
    b2 = jax.random.uniform(k4, (output_size,), jnp.float32, -bound2, bound2)

    ref = _reference(x, w1, b1, w2, b2)

    # f32 fc2 path: exact-precision check.
    w1p, b1p, w2p, b2p, O = prepare_params(w1, b1, w2, b2, fc2_dtype=jnp.float32)
    out_f32 = iris_forward_prepared(x, w1p, b1p, w2p, b2p,
                                    out_features=O, block_b=32)
    jax.block_until_ready(out_f32)
    assert out_f32.shape == (batch, output_size)
    assert jnp.allclose(out_f32, ref, atol=1e-5, rtol=1e-5), "f32 mismatch vs reference"

    # bf16-MXU fc2 path (default / fast): looser tolerance for bf16 operands.
    w1p, b1p, w2p, b2p, O = prepare_params(w1, b1, w2, b2, fc2_dtype=jnp.bfloat16)
    out_bf16 = iris_forward_prepared(x, w1p, b1p, w2p, b2p,
                                     out_features=O, block_b=32)
    jax.block_until_ready(out_bf16)
    assert out_bf16.shape == (batch, output_size)
    assert jnp.allclose(out_bf16, ref, atol=2e-2, rtol=2e-2), "bf16 mismatch vs reference"

    print("KERNEL_OK")
</pallas_src>

<mosaic_0001>
module attributes {stable_mosaic.version = 11 : i64} {
  func.func @iris_mlp_kernel(%arg0: i32, %arg1: memref<32x4xf32, #tpu.memory_space<vmem>>, %arg2: memref<4x128xf32, #tpu.memory_space<vmem>>, %arg3: memref<1x128xf32, #tpu.memory_space<vmem>>, %arg4: memref<128x128xf32, #tpu.memory_space<vmem>>, %arg5: memref<1x128xf32, #tpu.memory_space<vmem>>, %arg6: memref<32x3xf32, #tpu.memory_space<vmem>>) attributes {dimension_semantics = [#tpu.dimension_semantics<parallel>], iteration_bounds = array<i64: 4>, scalar_prefetch = 0 : i64, scratch_operands = 0 : i64, tpu.core_type = #tpu.core_type<tc>, window_params = [{transform_indices = @transform_0, window_bounds = array<i64: 32, 4>}, {pipeline_mode = #tpu.pipeline_mode<synchronous>, transform_indices = @transform_1, window_bounds = array<i64: 4, 128>}, {pipeline_mode = #tpu.pipeline_mode<synchronous>, transform_indices = @transform_2, window_bounds = array<i64: 1, 128>}, {pipeline_mode = #tpu.pipeline_mode<synchronous>, transform_indices = @transform_3, window_bounds = array<i64: 128, 128>}, {pipeline_mode = #tpu.pipeline_mode<synchronous>, transform_indices = @transform_4, window_bounds = array<i64: 1, 128>}, {transform_indices = @transform_5, window_bounds = array<i64: 32, 3>}]} {
    %c0 = arith.constant 0 : index
    %c0_0 = arith.constant 0 : index
    %0 = vector.load %arg1[%c0, %c0_0] : memref<32x4xf32, #tpu.memory_space<vmem>>, vector<32x4xf32>
    %1 = vector.extract_strided_slice %0 {offsets = [0, 0], sizes = [32, 1], strides = [1, 1]} : vector<32x4xf32> to vector<32x1xf32>
    %c0_1 = arith.constant 0 : index
    %c0_2 = arith.constant 0 : index
    %2 = vector.load %arg2[%c0_1, %c0_2] : memref<4x128xf32, #tpu.memory_space<vmem>>, vector<1x128xf32>
    %3 = vector.broadcast %1 : vector<32x1xf32> to vector<32x128xf32>
    %4 = vector.broadcast %2 : vector<1x128xf32> to vector<32x128xf32>
    %5 = arith.mulf %3, %4 : vector<32x128xf32>
    %6 = vector.extract_strided_slice %0 {offsets = [0, 1], sizes = [32, 1], strides = [1, 1]} : vector<32x4xf32> to vector<32x1xf32>
    %c1 = arith.constant 1 : index
    %c0_3 = arith.constant 0 : index
    %7 = vector.load %arg2[%c1, %c0_3] : memref<4x128xf32, #tpu.memory_space<vmem>>, vector<1x128xf32>
    %8 = vector.broadcast %6 : vector<32x1xf32> to vector<32x128xf32>
    %9 = vector.broadcast %7 : vector<1x128xf32> to vector<32x128xf32>
    %10 = arith.mulf %8, %9 : vector<32x128xf32>
    %11 = arith.addf %5, %10 : vector<32x128xf32>
    %12 = vector.extract_strided_slice %0 {offsets = [0, 2], sizes = [32, 1], strides = [1, 1]} : vector<32x4xf32> to vector<32x1xf32>
    %c2 = arith.constant 2 : index
    %c0_4 = arith.constant 0 : index
    %13 = vector.load %arg2[%c2, %c0_4] : memref<4x128xf32, #tpu.memory_space<vmem>>, vector<1x128xf32>
    %14 = vector.broadcast %12 : vector<32x1xf32> to vector<32x128xf32>
    %15 = vector.broadcast %13 : vector<1x128xf32> to vector<32x128xf32>
    %16 = arith.mulf %14, %15 : vector<32x128xf32>
    %17 = arith.addf %11, %16 : vector<32x128xf32>
    %18 = vector.extract_strided_slice %0 {offsets = [0, 3], sizes = [32, 1], strides = [1, 1]} : vector<32x4xf32> to vector<32x1xf32>
    %c3 = arith.constant 3 : index
    %c0_5 = arith.constant 0 : index
    %19 = vector.load %arg2[%c3, %c0_5] : memref<4x128xf32, #tpu.memory_space<vmem>>, vector<1x128xf32>
    %20 = vector.broadcast %18 : vector<32x1xf32> to vector<32x128xf32>
    %21 = vector.broadcast %19 : vector<1x128xf32> to vector<32x128xf32>
    %22 = arith.mulf %20, %21 : vector<32x128xf32>
    %23 = arith.addf %17, %22 : vector<32x128xf32>
    %c0_6 = arith.constant 0 : index
    %c0_7 = arith.constant 0 : index
    %24 = vector.load %arg3[%c0_6, %c0_7] : memref<1x128xf32, #tpu.memory_space<vmem>>, vector<1x128xf32>
    %25 = vector.broadcast %24 : vector<1x128xf32> to vector<32x128xf32>
    %26 = arith.addf %23, %25 : vector<32x128xf32>
    %cst = arith.constant 0.000000e+00 : f32
    %27 = vector.broadcast %cst : f32 to vector<32x128xf32>
    %28 = arith.maximumf %26, %27 : vector<32x128xf32>
    %c0_8 = arith.constant 0 : index
    %c0_9 = arith.constant 0 : index
    %29 = vector.load %arg4[%c0_8, %c0_9] : memref<128x128xf32, #tpu.memory_space<vmem>>, vector<128x128xf32>
    %cst_10 = arith.constant dense<0.000000e+00> : vector<32x128xf32>
    %30 = tpu.matmul %28, %29, %cst_10 {dimension_numbers = #tpu.dot_dimension_numbers<[1], [0], [0], [1], [0, 0, 1, 1], [], []>} : vector<32x128xf32>, vector<128x128xf32>, vector<32x128xf32> -> vector<32x128xf32>
    %c0_11 = arith.constant 0 : index
    %c0_12 = arith.constant 0 : index
    %31 = vector.load %arg5[%c0_11, %c0_12] : memref<1x128xf32, #tpu.memory_space<vmem>>, vector<1x128xf32>
    %32 = vector.broadcast %31 : vector<1x128xf32> to vector<32x128xf32>
    %33 = arith.addf %30, %32 : vector<32x128xf32>
    %34 = vector.extract_strided_slice %33 {offsets = [0, 0], sizes = [32, 3], strides = [1, 1]} : vector<32x128xf32> to vector<32x3xf32>
    %c0_13 = arith.constant 0 : index
    %c0_14 = arith.constant 0 : index
    %35 = vector.load %arg6[%c0_13, %c0_14] : memref<32x3xf32, #tpu.memory_space<vmem>>, vector<32x3xf32>
    tpu.vector_store %arg6[%c0_13, %c0_14], %34 {strides = array<i32>} : memref<32x3xf32, #tpu.memory_space<vmem>>, vector<32x3xf32>,
    return
  }
  func.func @transform_0(%arg0: i32) -> (i32, i32) {
    %c0_i32 = arith.constant 0 : i32
    %c0_i32_0 = arith.constant 0 : i32
    return %arg0, %c0_i32 : i32, i32
  }
  func.func @transform_1(%arg0: i32) -> (i32, i32) {
    %c0_i32 = arith.constant 0 : i32
    %c0_i32_0 = arith.constant 0 : i32
    %c0_i32_1 = arith.constant 0 : i32
    return %c0_i32, %c0_i32_0 : i32, i32
  }
  func.func @transform_2(%arg0: i32) -> (i32, i32) {
    %c0_i32 = arith.constant 0 : i32
    %c0_i32_0 = arith.constant 0 : i32
    %c0_i32_1 = arith.constant 0 : i32
    return %c0_i32, %c0_i32_0 : i32, i32
  }
  func.func @transform_3(%arg0: i32) -> (i32, i32) {
    %c0_i32 = arith.constant 0 : i32
    %c0_i32_0 = arith.constant 0 : i32
    %c0_i32_1 = arith.constant 0 : i32
    return %c0_i32, %c0_i32_0 : i32, i32
  }
  func.func @transform_4(%arg0: i32) -> (i32, i32) {
    %c0_i32 = arith.constant 0 : i32
    %c0_i32_0 = arith.constant 0 : i32
    %c0_i32_1 = arith.constant 0 : i32
    return %c0_i32, %c0_i32_0 : i32, i32
  }
  func.func @transform_5(%arg0: i32) -> (i32, i32) {
    %c0_i32 = arith.constant 0 : i32
    %c0_i32_0 = arith.constant 0 : i32
    return %arg0, %c0_i32 : i32, i32
  }
}

</mosaic_0001>

<llo_original>
// kernel: iris_forward_prepared.1
$region0: #{iris_forward_prepared.1}
  #allocation0 [shape = 'u32[]', space=smem, size = 0x4, offset = 0x4, fixed_abs, tag = 'smem constant byte address 0x4 - core index']
  #allocation1 [shape = 'u32[72,128]{1,0:T(1,128)}', space=vmem, size = 0x9000, scoped, tag = 'internal scratch']
  %s0 = inlined_call_operand.vmem [shape: f32[100,4], index: 0, kind: input, shape index: {}]
  %s1 = inlined_call_operand.vmem [shape: f32[4,128], index: 1, kind: input, shape index: {}]
  %s2 = inlined_call_operand.vmem [shape: f32[1,128], index: 2, kind: input, shape index: {}]
  %s3 = inlined_call_operand.hbm [shape: f32[128,128], index: 3, kind: input, shape index: {}]
  %s4 = inlined_call_operand.vmem [shape: f32[1,128], index: 4, kind: input, shape index: {}]
  %s5 = inlined_call_operand.vmem [shape: f32[100,3], index: 5, kind: output, shape index: {}]
  %s6 = sld [smem:[#allocation0]]
  $region105: #{iris_forward_prepared.1} parent=0
    _
  %s8 = ssub.s32 1, %s6
  %s9 = scalar_select 0, %s8, %s6
  $region1: #{iris_forward_prepared.1} parent=0
    #allocation2 [shape = 'u8[65536]{0}', space=vmem, size = 0x10000, scoped, tag = 'input window, operand 3, single buffered']
    #allocation3 [shape = 's32[2]{0}', space=sflag, size = 0x8, scoped, tag = 'scoped memory for iris_forward_prepared.1']
    #allocation4 [shape = 'u8[32768]{0}', space=vmem, size = 0x8000, scoped, tag = 'output window, operand 0']
    %10 = vsyncpa [#allocation3], 0
    loop: start=0, step=1, limit=6
    $region2: #{iris_forward_prepared.1} parent=1 // loop_pre_header
      _
    $region3: #{iris_forward_prepared.1} parent=1 // loop_header
      %s12 = sphi 0, %s16
      %p13 = scmp.ge.s32.totalorder %s12, 6
      %s22 = sphi 0, %s24
      %s25 = sphi 0, %s22
      %s26 = sphi 0, %s25
      %s42 = sphi 0, %s26
      %s46 = sphi 0, %s46
      %s48 = sphi 0, %s46
      %s49 = sphi 0, %s48
      %s63 = sphi 0, %s49
      %s67 = sphi 0, %s67
      %s69 = sphi 0, %s67
      %s70 = sphi 0, %s69
      %s84 = sphi 0, %s70
      %s88 = sphi 0, %s88
      %s90 = sphi 0, %s88
      %s91 = sphi 0, %s90
      %s105 = sphi 0, %s91
      %s109 = sphi 0, %s109
      %s111 = sphi 0, %s109
      %s112 = sphi 0, %s111
      %s126 = sphi 0, %s112
      %s132 = sphi 0, %s134
      %s135 = sphi 0, %s132
      %s136 = sphi 0, %s135
      %s152 = sphi 0, %s136
    $region4: #{iris_forward_prepared.1} parent=1 // loop_header_branch
      %15 = sbr.rel (%p13) target = $region8
    $region5: #{iris_forward_prepared.1} parent=1 // loop_body
      %s17 = ssub.s32 %s12, 1
      %s18 = ssub.s32 %s12, 2
      %s19 = sadd.s32 %s12, 1
      %s20 = ssub.s32 %s12, %s19
      %p21 = scmp.eq.s32.totalorder %s20, 0
      %s23 = sadd.s32 %s22, 1
      %s24 = scalar_select %p21, %s22, %s23
      %p27 = pneg %p21
      %p28 = scmp.eq.s32.totalorder %s12, 3
      %p29 = por %p27, %p28
      %p30 = scmp.ne.s32.totalorder %s22, %s25
      %p31 = scmp.eq.s32.totalorder %s12, 0
      %p32 = por %p30, %p31
      %p33 = scmp.ne.s32.totalorder %s22, %s25
      %p34 = scmp.eq.s32.totalorder %s17, 3
      %p35 = por %p33, %p34
      %p36 = scmp.ne.s32.totalorder %s25, %s26
      %p37 = scmp.eq.s32.totalorder %s17, 0
      %p38 = por %p36, %p37
      %p39 = scmp.ne.s32.totalorder %s25, %s26
      %p40 = scmp.eq.s32.totalorder %s18, 3
      %p41 = por %p39, %p40
      %p43 = scmp.ne.s32.totalorder %s26, %s42
      %p44 = scmp.eq.s32.totalorder %s18, 0
      %p45 = por %p43, %p44
      %s47 = sadd.s32 %s46, 1
      %p50 = scmp.eq.s32.totalorder %s12, 3
      %p51 = scmp.ne.s32.totalorder %s46, %s48
      %p52 = scmp.eq.s32.totalorder %s12, 0
      %p53 = por %p51, %p52
      %p54 = scmp.ne.s32.totalorder %s46, %s48
      %p55 = scmp.eq.s32.totalorder %s17, 3
      %p56 = por %p54, %p55
      %p57 = scmp.ne.s32.totalorder %s48, %s49
      %p58 = scmp.eq.s32.totalorder %s17, 0
      %p59 = por %p57, %p58
      %p60 = scmp.ne.s32.totalorder %s48, %s49
      %p61 = scmp.eq.s32.totalorder %s18, 3
      %p62 = por %p60, %p61
      %p64 = scmp.ne.s32.totalorder %s49, %s63
      %p65 = scmp.eq.s32.totalorder %s18, 0
      %p66 = por %p64, %p65
      %s68 = sadd.s32 %s67, 1
      %p71 = scmp.eq.s32.totalorder %s12, 3
      %p72 = scmp.ne.s32.totalorder %s67, %s69
      %p73 = scmp.eq.s32.totalorder %s12, 0
      %p74 = por %p72, %p73
      %p75 = scmp.ne.s32.totalorder %s67, %s69
      %p76 = scmp.eq.s32.totalorder %s17, 3
      %p77 = por %p75, %p76
      %p78 = scmp.ne.s32.totalorder %s69, %s70
      %p79 = scmp.eq.s32.totalorder %s17, 0
      %p80 = por %p78, %p79
      %p81 = scmp.ne.s32.totalorder %s69, %s70
      %p82 = scmp.eq.s32.totalorder %s18, 3
      %p83 = por %p81, %p82
      %p85 = scmp.ne.s32.totalorder %s70, %s84
      %p86 = scmp.eq.s32.totalorder %s18, 0
      %p87 = por %p85, %p86
      %s89 = sadd.s32 %s88, 1
      %p92 = scmp.eq.s32.totalorder %s12, 3
      %p93 = scmp.ne.s32.totalorder %s88, %s90
      %p94 = scmp.eq.s32.totalorder %s12, 0
      %p95 = por %p93, %p94
      %p96 = scmp.ne.s32.totalorder %s88, %s90
      %p97 = scmp.eq.s32.totalorder %s17, 3
      %p98 = por %p96, %p97
      %p99 = scmp.ne.s32.totalorder %s90, %s91
      %p100 = scmp.eq.s32.totalorder %s17, 0
      %p101 = por %p99, %p100
      %p102 = scmp.ne.s32.totalorder %s90, %s91
      %p103 = scmp.eq.s32.totalorder %s18, 3
      %p104 = por %p102, %p103
      %p106 = scmp.ne.s32.totalorder %s91, %s105
      %p107 = scmp.eq.s32.totalorder %s18, 0
      %p108 = por %p106, %p107
      %s110 = sadd.s32 %s109, 1
      %p113 = scmp.eq.s32.totalorder %s12, 3
      %p114 = scmp.ne.s32.totalorder %s109, %s111
      %p115 = scmp.eq.s32.totalorder %s12, 0
      %p116 = por %p114, %p115
      %p117 = scmp.ne.s32.totalorder %s109, %s111
      %p118 = scmp.eq.s32.totalorder %s17, 3
      %p119 = por %p117, %p118
      %p120 = scmp.ne.s32.totalorder %s111, %s112
      %p121 = scmp.eq.s32.totalorder %s17, 0
      %p122 = por %p120, %p121
      %p123 = scmp.ne.s32.totalorder %s111, %s112
      %p124 = scmp.eq.s32.totalorder %s18, 3
      %p125 = por %p123, %p124
      %p127 = scmp.ne.s32.totalorder %s112, %s126
      %p128 = scmp.eq.s32.totalorder %s18, 0
      %p129 = por %p127, %p128
      %s130 = ssub.s32 %s12, %s19
      %p131 = scmp.eq.s32.totalorder %s130, 0
      %s133 = sadd.s32 %s132, 1
      %s134 = scalar_select %p131, %s132, %s133
      %p137 = pneg %p131
      %p138 = scmp.eq.s32.totalorder %s12, 3
      %p139 = por %p137, %p138
      %p140 = scmp.ne.s32.totalorder %s132, %s135
      %p141 = scmp.eq.s32.totalorder %s12, 0
      %p142 = por %p140, %p141
      %p143 = scmp.ne.s32.totalorder %s132, %s135
      %p144 = scmp.eq.s32.totalorder %s17, 3
      %p145 = por %p143, %p144
      %p146 = scmp.ne.s32.totalorder %s135, %s136
      %p147 = scmp.eq.s32.totalorder %s17, 0
      %p148 = por %p146, %p147
      %p149 = scmp.ne.s32.totalorder %s135, %s136
      %p150 = scmp.eq.s32.totalorder %s18, 3
      %p151 = por %p149, %p150
      %p153 = scmp.ne.s32.totalorder %s136, %s152
      %p154 = scmp.eq.s32.totalorder %s18, 0
      %p155 = por %p153, %p154
      %p156 = scmp.le.s32.totalorder 1, %s12
      %p157 = scmp.lt.s32.totalorder %s12, 5
      %p158 = pnand %p156, %p157
      %p159 = pneg %p158
      // Predicated region
      $region9: #{iris_forward_prepared.1} parent=5 // pred_check
        _
      $region10: #{iris_forward_prepared.1} parent=5 // pred_check_branch
        %161 = sbr.rel (%p158) target = $region12
      $region11: #{iris_forward_prepared.1} parent=5 // pred_region
        %s162 = ssub.s32 %s12, 1
        // Predicated region
        $region13: #{iris_forward_prepared.1} parent=11 // pred_check
          %p163 = pneg %p59
        $region14: #{iris_forward_prepared.1} parent=11 // pred_check_branch
          %165 = sbr.rel (%p163) target = $region16
        $region15: #{iris_forward_prepared.1} parent=11 // pred_region
          _
        $region16: #{iris_forward_prepared.1} parent=11 // pred_fallthru
          _
        // Predicated region
        $region17: #{iris_forward_prepared.1} parent=11 // pred_check
          %p166 = pneg %p80
        $region18: #{iris_forward_prepared.1} parent=11 // pred_check_branch
          %168 = sbr.rel (%p166) target = $region20
        $region19: #{iris_forward_prepared.1} parent=11 // pred_region
          _
        $region20: #{iris_forward_prepared.1} parent=11 // pred_fallthru
          _
        // Predicated region
        $region21: #{iris_forward_prepared.1} parent=11 // pred_check
          %p169 = pneg %p101
        $region22: #{iris_forward_prepared.1} parent=11 // pred_check_branch
          %171 = sbr.rel (%p169) target = $region24
        $region23: #{iris_forward_prepared.1} parent=11 // pred_region
          %173 = vsyncadd [#allocation3], 0
          %s174 = sshll.u32 %s3, 4
          %s175 = int_to_ptr.hbm [resolvable:$true] %s174
          %s176 = sshll.u32 [#allocation2], 4
          %s177 = int_to_ptr.vmem [resolvable:$true] %s176
          %182 = dma.hbm_to_vmem [thread:$0]  %s175, 2048, %s177, [#allocation3], 128, 128, 8
        $region24: #{iris_forward_prepared.1} parent=11 // pred_fallthru
          _
        // Predicated region
        $region25: #{iris_forward_prepared.1} parent=11 // pred_check
          %p183 = pneg %p122
        $region26: #{iris_forward_prepared.1} parent=11 // pred_check_branch
          %185 = sbr.rel (%p183) target = $region28
        $region27: #{iris_forward_prepared.1} parent=11 // pred_region
          _
        $region28: #{iris_forward_prepared.1} parent=11 // pred_fallthru
          _
      $region12: #{iris_forward_prepared.1} parent=5 // pred_fallthru
        _
      %p186 = scmp.lt.s32.totalorder %s12, 4
      // Predicated region
      $region29: #{iris_forward_prepared.1} parent=5 // pred_check
        %p187 = pneg %p186
      $region30: #{iris_forward_prepared.1} parent=5 // pred_check_branch
        %189 = sbr.rel (%p187) target = $region32
      $region31: #{iris_forward_prepared.1} parent=5 // pred_region
        // Predicated region
        $region33: #{iris_forward_prepared.1} parent=31 // pred_check
          %p190 = pneg %p32
        $region34: #{iris_forward_prepared.1} parent=31 // pred_check_branch
          %192 = sbr.rel (%p190) target = $region36
        $region35: #{iris_forward_prepared.1} parent=31 // pred_region
          %s193 = smul.u32 4, %s12
          %s194 = ssub.s32 13, %s193
          %p195 = scmp.lt.s32.totalorder %s194, 4
          %s196 = scalar_select %p195, %s194, 4
          %s197 = smul.u32 8, %s196
          %p198 = scmp.lt.s32.totalorder %s193, 12
          %s199 = scalar_select %p198, %s193, 12
          %s200 = smul.addr %s199, 8
          %s201 = scalar_lea.vmem %s0, %s200
          %s202 = smul.u32 4, %s12
          %s203 = ssub.s32 13, %s202
          %p204 = scmp.lt.s32.totalorder %s203, 4
          %s205 = scalar_select %p204, %s203, 4
          %s206 = smul.u32 8, %s205
        $region36: #{iris_forward_prepared.1} parent=31 // pred_fallthru
          _
      $region32: #{iris_forward_prepared.1} parent=5 // pred_fallthru
        _
      %p207 = scmp.le.s32.totalorder 1, %s12
      %p208 = scmp.lt.s32.totalorder %s12, 5
      %p209 = pnand %p207, %p208
      %p210 = pneg %p209
      // Predicated region
      $region37: #{iris_forward_prepared.1} parent=5 // pred_check
        _
      $region38: #{iris_forward_prepared.1} parent=5 // pred_check_branch
        %212 = sbr.rel (%p209) target = $region40
      $region39: #{iris_forward_prepared.1} parent=5 // pred_region
        %s213 = ssub.s32 %s12, 1
        // Predicated region
        $region41: #{iris_forward_prepared.1} parent=39 // pred_check
          %p214 = pneg %p101
        $region42: #{iris_forward_prepared.1} parent=39 // pred_check_branch
          %216 = sbr.rel (%p214) target = $region44
        $region43: #{iris_forward_prepared.1} parent=39 // pred_region
          %218 = dma.done [#allocation3], 2048
        $region44: #{iris_forward_prepared.1} parent=39 // pred_fallthru
          _
        %s219 = smul.u32 4, %s17
        %s220 = ssub.s32 13, %s219
        %p221 = scmp.lt.s32.totalorder %s220, 4
        %s222 = scalar_select %p221, %s220, 4
        %s223 = smul.u32 8, %s222
        %p224 = scmp.lt.s32.totalorder %s219, 12
        %s225 = scalar_select %p224, %s219, 12
        %s226 = smul.addr %s225, 8
        %s227 = scalar_lea.vmem %s0, %s226
        %p228 = pneg %p38
        %p229 = pneg %p35
        %p230 = pneg %p59
        %p231 = pneg %p56
        %p232 = pneg %p80
        %p233 = pneg %p77
        %p234 = pneg %p101
        %p235 = pneg %p98
        %p236 = pneg %p122
        %p237 = pneg %p119
        %p238 = pneg %p148
        %p239 = pneg %p145
        %s240 = sand.u32 %s135, 1
        %s241 = sand.u32 %s135, 1
        %s242 = smul.addr %s241, 32
        %s243 = scalar_lea.vmem [#allocation4], %s242
        %s244 = smul.u32 4, %s17
        %s245 = ssub.s32 13, %s244
        %p246 = scmp.lt.s32.totalorder %s245, 4
        %s247 = scalar_select %p246, %s245, 4
        %s248 = smul.u32 8, %s247
        %p249 = scmp.lt.s32.totalorder %s244, 12
        %s250 = scalar_select %p249, %s244, 12
        %s251 = smul.addr %s250, 8
        %s252 = scalar_lea.vmem %s0, %s251
        %s253 = smul.u32 4, %s17
        %s254 = ssub.s32 13, %s253
        %p255 = scmp.lt.s32.totalorder %s254, 4
        %s256 = scalar_select %p255, %s254, 4
        %s257 = smul.u32 8, %s256
        %s258 = smul.u32 4, %s17
        %s259 = ssub.s32 13, %s258
        %p260 = scmp.lt.s32.totalorder %s259, 4
        %s261 = scalar_select %p260, %s259, 4
        %s262 = smul.u32 8, %s261
        %v263 = vld [vmem:[%s252] sm:$0xff]
        %v264 = vld [vmem:[%s252 + $0x8] sm:$0xff]
        %v265 = vld [vmem:[%s252 + $0x10] sm:$0xff]
        %v266 = vld [vmem:[%s252 + $0x18] sm:$0xff]
        %v267 = vld [vmem:[%s1] sm:$0x1]
        %269 = vset.pattern.permute.xlu0 0
        %270 = vperm.xlu0 %269, %v263
        %v271 = vpop.permute.xlu0 %270
        %274 = vset.pattern.permute.xlu0 0
        %275 = vperm.xlu0 %274, %v264
        %v276 = vpop.permute.xlu0 %275
        %279 = vset.pattern.permute.xlu0 0
        %280 = vperm.xlu0 %279, %v265
        %v281 = vpop.permute.xlu0 %280
        %284 = vset.pattern.permute.xlu0 0
        %285 = vperm.xlu0 %284, %v266
        %v286 = vpop.permute.xlu0 %285
        %v288 = vperm.slane %v267, 0
        %v289 = vmul.f32 %v271, %v288
        %v290 = vmul.f32 %v276, %v288
        %v291 = vmul.f32 %v281, %v288
        %v292 = vmul.f32 %v286, %v288
        %v293 = vld [vmem:[%s1 + $0x1] sm:$0x1]
        %294 = vset.pattern.permute.xlu0 1
        %295 = vperm.xlu0 %294, %v263
        %v296 = vpop.permute.xlu0 %295
        %298 = vset.pattern.permute.xlu0 1
        %299 = vperm.xlu0 %298, %v264
        %v300 = vpop.permute.xlu0 %299
        %302 = vset.pattern.permute.xlu0 1
        %303 = vperm.xlu0 %302, %v265
        %v304 = vpop.permute.xlu0 %303
        %306 = vset.pattern.permute.xlu0 1
        %307 = vperm.xlu0 %306, %v266
        %v308 = vpop.permute.xlu0 %307
        %v310 = vperm.slane %v293, 0
        %v311 = vmul.f32 %v296, %v310
        %v312 = vmul.f32 %v300, %v310
        %v313 = vmul.f32 %v304, %v310
        %v314 = vmul.f32 %v308, %v310
        %v315 = vadd.f32 %v289, %v311
        %v316 = vadd.f32 %v290, %v312
        %v317 = vadd.f32 %v291, %v313
        %v318 = vadd.f32 %v292, %v314
        %v319 = vld [vmem:[%s1 + $0x2] sm:$0x1]
        %320 = vset.pattern.permute.xlu0 2
        %321 = vperm.xlu0 %320, %v263
        %v322 = vpop.permute.xlu0 %321
        %324 = vset.pattern.permute.xlu0 2
        %325 = vperm.xlu0 %324, %v264
        %v326 = vpop.permute.xlu0 %325
        %328 = vset.pattern.permute.xlu0 2
        %329 = vperm.xlu0 %328, %v265
        %v330 = vpop.permute.xlu0 %329
        %332 = vset.pattern.permute.xlu0 2
        %333 = vperm.xlu0 %332, %v266
        %v334 = vpop.permute.xlu0 %333
        %v336 = vperm.slane %v319, 0
        %v337 = vmul.f32 %v322, %v336
        %v338 = vmul.f32 %v326, %v336
        %v339 = vmul.f32 %v330, %v336
        %v340 = vmul.f32 %v334, %v336
        %v341 = vadd.f32 %v315, %v337
        %v342 = vadd.f32 %v316, %v338
        %v343 = vadd.f32 %v317, %v339
        %v344 = vadd.f32 %v318, %v340
        %v345 = vld [vmem:[%s1 + $0x3] sm:$0x1]
        %346 = vset.pattern.permute.xlu0 3
        %347 = vperm.xlu0 %346, %v263
        %v348 = vpop.permute.xlu0 %347
        %350 = vset.pattern.permute.xlu0 3
        %351 = vperm.xlu0 %350, %v264
        %v352 = vpop.permute.xlu0 %351
        %354 = vset.pattern.permute.xlu0 3
        %355 = vperm.xlu0 %354, %v265
        %v356 = vpop.permute.xlu0 %355
        %358 = vset.pattern.permute.xlu0 3
        %359 = vperm.xlu0 %358, %v266
        %v360 = vpop.permute.xlu0 %359
        %v362 = vperm.slane %v345, 0
        %v363 = vmul.f32 %v348, %v362
        %v364 = vmul.f32 %v352, %v362
        %v365 = vmul.f32 %v356, %v362
        %v366 = vmul.f32 %v360, %v362
        %v367 = vadd.f32 %v341, %v363
        %v368 = vadd.f32 %v342, %v364
        %v369 = vadd.f32 %v343, %v365
        %v370 = vadd.f32 %v344, %v366
        %v371 = vld [vmem:[%s2] sm:$0x1]
        %v373 = vperm.slane %v371, 0
        %v375 = vadd.f32 %v367, %v373
        %v376 = vadd.f32 %v368, %v373
        %v377 = vadd.f32 %v369, %v373
        %v378 = vadd.f32 %v370, %v373
        %v379 = vmax.f32 %v375, 0.0
        %v380 = vmax.f32 %v376, 0.0
        %v381 = vmax.f32 %v377, 0.0
        %v382 = vmax.f32 %v378, 0.0
        %v383 = vld [vmem:[#allocation2] sm:$0xff]
        %v384 = vld [vmem:[#allocation2 + $0x8] sm:$0xff]
        %v385 = vld [vmem:[#allocation2 + $0x10] sm:$0xff]
        %v386 = vld [vmem:[#allocation2 + $0x18] sm:$0xff]
        %v387 = vld [vmem:[#allocation2 + $0x20] sm:$0xff]
        %v388 = vld [vmem:[#allocation2 + $0x28] sm:$0xff]
        %v389 = vld [vmem:[#allocation2 + $0x30] sm:$0xff]
        %v390 = vld [vmem:[#allocation2 + $0x38] sm:$0xff]
        %v391 = vld [vmem:[#allocation2 + $0x40] sm:$0xff]
        %v392 = vld [vmem:[#allocation2 + $0x48] sm:$0xff]
        %v393 = vld [vmem:[#allocation2 + $0x50] sm:$0xff]
        %v394 = vld [vmem:[#allocation2 + $0x58] sm:$0xff]
        %v395 = vld [vmem:[#allocation2 + $0x60] sm:$0xff]
        %v396 = vld [vmem:[#allocation2 + $0x68] sm:$0xff]
        %v397 = vld [vmem:[#allocation2 + $0x70] sm:$0xff]
        %v398 = vld [vmem:[#allocation2 + $0x78] sm:$0xff]
        %v399 = vld [vmem:[%s4] sm:$0x1]
        %v401 = vperm.slane %v399, 0
        %403 = vmatpush.msra.mxu0 %v398
        %404 = vmatpush.msra.mxu0 %v397
        %405 = vmatpush.msra.mxu0 %v396
        %406 = vmatpush.msra.mxu0 %v395
        %407 = vmatpush.msra.mxu0 %v394
        %408 = vmatpush.msra.mxu0 %v393
        %409 = vmatpush.msra.mxu0 %v392
        %410 = vmatpush.msra.mxu0 %v391
        %411 = vmatpush.msra.mxu0 %v390
        %412 = vmatpush.msra.mxu0 %v389
        %413 = vmatpush.msra.mxu0 %v388
        %414 = vmatpush.msra.mxu0 %v387
        %415 = vmatpush.msra.mxu0 %v386
        %416 = vmatpush.msra.mxu0 %v385
        %417 = vmatpush.msra.mxu0 %v384
        %418 = vmatpush.msra.mxu0 %v383
        %419 = vmatmul.f32.gmra.mxu0 %v379
        %v420 = vpop.f32.mrf.mxu0
        %v421 = vadd.f32 %v401, %v420
        %422 = vmatmul.f32.gmra.mxu0 %v380
        %v423 = vpop.f32.mrf.mxu0
        %v424 = vadd.f32 %v401, %v423
        %425 = vmatmul.f32.gmra.mxu0 %v381
        %v426 = vpop.f32.mrf.mxu0
        %v427 = vadd.f32 %v401, %v426
        %428 = vmatmul.f32.gmra.mxu0 %v382
        %v429 = vpop.f32.mrf.mxu0
        %v430 = vadd.f32 %v401, %v429
        %431 = vdwg.mxu0
        %vm432 = vcmask 23552
        %433 = vst.msk [vmem:[%s243] sm:$0xff] %vm432, %v421
        %434 = vst.msk [vmem:[%s243 + $0x8] sm:$0xff] %vm432, %v424
        %435 = vst.msk [vmem:[%s243 + $0x10] sm:$0xff] %vm432, %v427
        %436 = vst.msk [vmem:[%s243 + $0x18] sm:$0xff] %vm432, %v430
        %s437 = sand.u32 %s135, 1
        %s438 = sand.u32 %s135, 1
        %s439 = smul.addr %s438, 32
        %s440 = scalar_lea.vmem [#allocation4], %s439
        // Predicated region
        $region45: #{iris_forward_prepared.1} parent=39 // pred_check
          %p441 = pneg %p145
        $region46: #{iris_forward_prepared.1} parent=39 // pred_check_branch
          %443 = sbr.rel (%p441) target = $region48
        $region47: #{iris_forward_prepared.1} parent=39 // pred_region
          %s444 = smul.u32 4, %s17
          %s445 = ssub.s32 13, %s444
          %p446 = scmp.lt.s32.totalorder %s445, 4
          %s447 = scalar_select %p446, %s445, 4
          %s448 = smul.u32 8, %s447
          %p449 = scmp.ne.s32.totalorder 0, %s448
          %s450 = smul.addr %s444, 8
          %s451 = scalar_lea.vmem %s5, %s450
          // Predicated region
          $region49: #{iris_forward_prepared.1} parent=47 // pred_check
            %p452 = pneg %p449
          $region50: #{iris_forward_prepared.1} parent=47 // pred_check_branch
            %454 = sbr.rel (%p452) target = $region52
          $region51: #{iris_forward_prepared.1} parent=47 // pred_region
            // Predicated region
            $region53: #{iris_forward_prepared.1} parent=51 // pred_check
              _
            $region54: #{iris_forward_prepared.1} parent=51 // pred_check_branch
              %456 = sbr.rel (0) target = $region56
            $region55: #{iris_forward_prepared.1} parent=51 // pred_region
              // Predicated region
              $region75: #{iris_forward_prepared.1} parent=55 // pred_check
                _
              $region76: #{iris_forward_prepared.1} parent=55 // pred_check_branch
                %512 = sbr.rel (0) target = $region78
              $region77: #{iris_forward_prepared.1} parent=55 // pred_region
                %s513 = sshrl.u32 %s447, 2
                // While loop
                $region79: #{iris_forward_prepared.1} parent=77 // loop_pre_header
                  _
                $region80: #{iris_forward_prepared.1} parent=77 // loop_header
                  %s515 = sphi 0, %s517
                  %p516 = scmp.ge.s32.totalorder %s515, %s513
                  %s520 = sphi 0, %s533
                  %s521 = sphi %s440, %s536
                  %s522 = sphi %s451, %s537
                $region81: #{iris_forward_prepared.1} parent=77 // loop_header_branch
                  %519 = sbr.rel (%p516) target = $region85
                $region82: #{iris_forward_prepared.1} parent=77 // loop_body
                  %v523 = vld [vmem:[%s521] sm:$0xff]
                  %524 = vst [vmem:[%s522] sm:$0xff] %v523
                  %v525 = vld [vmem:[%s521 + $0x8] sm:$0xff]
                  %526 = vst [vmem:[%s522 + $0x8] sm:$0xff] %v525
                  %v527 = vld [vmem:[%s521 + $0x10] sm:$0xff]
                  %528 = vst [vmem:[%s522 + $0x10] sm:$0xff] %v527
                  %v529 = vld [vmem:[%s521 + $0x18] sm:$0xff]
                  %530 = vst [vmem:[%s522 + $0x18] sm:$0xff] %v529
                  %s531 = sadd.s32 1, %s520
                  %p532 = scmp.ge.s32.totalorder %s531, %s513
                  %s533 = scalar_select %p532, 0, %s531
                  %s534 = smul.u32 %s533, 32
                  %s535 = smul.u32 %s533, 32
                  %s536 = scalar_lea.vmem %s440, %s534 [#allocation4]
                  %s537 = scalar_lea.vmem %s451, %s535
                $region83: #{iris_forward_prepared.1} parent=77 // loop_footer
                  %s517 = sadd.s32 %s515, 1
                $region84: #{iris_forward_prepared.1} parent=77 // loop_footer_branch
                  %514 = sbr.rel target = $region80
                $region85: #{iris_forward_prepared.1} parent=77 // loop_exit
                  _
                %s538 = sshrl.u32 %s447, 2
                %s539 = sand.u32 %s447, 3
                %s540 = smul.u32 %s538, 4
                %s541 = smul.u32 8, %s540
                %s542 = scalar_lea.vmem %s440, %s541 [#allocation4]
                %s543 = smul.u32 8, %s540
                %s544 = scalar_lea.vmem %s451, %s543
                // While loop
                $region86: #{iris_forward_prepared.1} parent=77 // loop_pre_header
                  _
                $region87: #{iris_forward_prepared.1} parent=77 // loop_header
                  %s546 = sphi 0, %s548
                  %p547 = scmp.ge.s32.totalorder %s546, %s539
                  %s551 = sphi 0, %s558
                  %s552 = sphi %s542, %s561
                  %s553 = sphi %s544, %s562
                $region88: #{iris_forward_prepared.1} parent=77 // loop_header_branch
                  %550 = sbr.rel (%p547) target = $region92
                $region89: #{iris_forward_prepared.1} parent=77 // loop_body
                  %v554 = vld [vmem:[%s552] sm:$0xff]
                  %555 = vst [vmem:[%s553] sm:$0xff] %v554
                  %s556 = sadd.s32 1, %s551
                  %p557 = scmp.ge.s32.totalorder %s556, %s539
                  %s558 = scalar_select %p557, 0, %s556
                  %s559 = smul.u32 %s558, 8
                  %s560 = smul.u32 %s558, 8
                  %s561 = scalar_lea.vmem %s542, %s559 [#allocation4]
                  %s562 = scalar_lea.vmem %s544, %s560
                $region90: #{iris_forward_prepared.1} parent=77 // loop_footer
                  %s548 = sadd.s32 %s546, 1
                $region91: #{iris_forward_prepared.1} parent=77 // loop_footer_branch
                  %545 = sbr.rel target = $region87
                $region92: #{iris_forward_prepared.1} parent=77 // loop_exit
                  _
              $region78: #{iris_forward_prepared.1} parent=55 // pred_fallthru
                _
              // Predicated region
              $region93: #{iris_forward_prepared.1} parent=55 // pred_check
                _
              $region94: #{iris_forward_prepared.1} parent=55 // pred_check_branch
                %564 = sbr.rel target = $region96
              $region95: #{iris_forward_prepared.1} parent=55 // pred_region
                _
              $region96: #{iris_forward_prepared.1} parent=55 // pred_fallthru
                _
            $region56: #{iris_forward_prepared.1} parent=51 // pred_fallthru
              _
            // Predicated region
            $region57: #{iris_forward_prepared.1} parent=51 // pred_check
              _
            $region58: #{iris_forward_prepared.1} parent=51 // pred_check_branch
              %458 = sbr.rel target = $region60
            $region59: #{iris_forward_prepared.1} parent=51 // pred_region
              %s460 = ssub.s32 256, 1
              %s461 = sshrl.u32 %s447, 2
              // While loop
              $region61: #{iris_forward_prepared.1} parent=59 // loop_pre_header
                _
              $region62: #{iris_forward_prepared.1} parent=59 // loop_header
                %s463 = sphi 0, %s465
                %p464 = scmp.ge.s32.totalorder %s463, %s461
                %s468 = sphi 0, %s481
                %s469 = sphi %s440, %s484
                %s470 = sphi %s451, %s485
              $region63: #{iris_forward_prepared.1} parent=59 // loop_header_branch
                %467 = sbr.rel (%p464) target = $region67
              $region64: #{iris_forward_prepared.1} parent=59 // loop_body
                %v471 = vld [vmem:[%s469] sm:%s460]
                %472 = vst [vmem:[%s470] sm:%s460] %v471
                %v473 = vld [vmem:[%s469 + $0x8] sm:%s460]
                %474 = vst [vmem:[%s470 + $0x8] sm:%s460] %v473
                %v475 = vld [vmem:[%s469 + $0x10] sm:%s460]
                %476 = vst [vmem:[%s470 + $0x10] sm:%s460] %v475
                %v477 = vld [vmem:[%s469 + $0x18] sm:%s460]
                %478 = vst [vmem:[%s470 + $0x18] sm:%s460] %v477
                %s479 = sadd.s32 1, %s468
                %p480 = scmp.ge.s32.totalorder %s479, %s461
                %s481 = scalar_select %p480, 0, %s479
                %s482 = smul.u32 %s481, 32
                %s483 = smul.u32 %s481, 32
                %s484 = scalar_lea.vmem %s440, %s482 [#allocation4]
                %s485 = scalar_lea.vmem %s451, %s483
              $region65: #{iris_forward_prepared.1} parent=59 // loop_footer
                %s465 = sadd.s32 %s463, 1
              $region66: #{iris_forward_prepared.1} parent=59 // loop_footer_branch
                %462 = sbr.rel target = $region62
              $region67: #{iris_forward_prepared.1} parent=59 // loop_exit
                _
              %s486 = sshrl.u32 %s447, 2
              %s487 = sand.u32 %s447, 3
              %s488 = smul.u32 %s486, 4
              %s489 = smul.u32 8, %s488
              %s490 = scalar_lea.vmem %s440, %s489 [#allocation4]
              %s491 = smul.u32 8, %s488
              %s492 = scalar_lea.vmem %s451, %s491
              // While loop
              $region68: #{iris_forward_prepared.1} parent=59 // loop_pre_header
                _
              $region69: #{iris_forward_prepared.1} parent=59 // loop_header
                %s494 = sphi 0, %s496
                %p495 = scmp.ge.s32.totalorder %s494, %s487
                %s499 = sphi 0, %s506
                %s500 = sphi %s490, %s509
                %s501 = sphi %s492, %s510
              $region70: #{iris_forward_prepared.1} parent=59 // loop_header_branch
                %498 = sbr.rel (%p495) target = $region74
              $region71: #{iris_forward_prepared.1} parent=59 // loop_body
                %v502 = vld [vmem:[%s500] sm:%s460]
                %503 = vst [vmem:[%s501] sm:%s460] %v502
                %s504 = sadd.s32 1, %s499
                %p505 = scmp.ge.s32.totalorder %s504, %s487
                %s506 = scalar_select %p505, 0, %s504
                %s507 = smul.u32 %s506, 8
                %s508 = smul.u32 %s506, 8
                %s509 = scalar_lea.vmem %s490, %s507 [#allocation4]
                %s510 = scalar_lea.vmem %s492, %s508
              $region72: #{iris_forward_prepared.1} parent=59 // loop_footer
                %s496 = sadd.s32 %s494, 1
              $region73: #{iris_forward_prepared.1} parent=59 // loop_footer_branch
                %493 = sbr.rel target = $region69
              $region74: #{iris_forward_prepared.1} parent=59 // loop_exit
                _
            $region60: #{iris_forward_prepared.1} parent=51 // pred_fallthru
              _
          $region52: #{iris_forward_prepared.1} parent=47 // pred_fallthru
            _
          %565 = vnop
        $region48: #{iris_forward_prepared.1} parent=39 // pred_fallthru
          _
      $region40: #{iris_forward_prepared.1} parent=5 // pred_fallthru
        _
      %p566 = scmp.le.s32.totalorder 2, %s12
      // Predicated region
      $region97: #{iris_forward_prepared.1} parent=5 // pred_check
        %p567 = pneg %p566
      $region98: #{iris_forward_prepared.1} parent=5 // pred_check_branch
        %569 = sbr.rel (%p567) target = $region100
      $region99: #{iris_forward_prepared.1} parent=5 // pred_region
        %s570 = ssub.s32 %s12, 2
        // Predicated region
        $region101: #{iris_forward_prepared.1} parent=99 // pred_check
          %p571 = pneg %p151
        $region102: #{iris_forward_prepared.1} parent=99 // pred_check_branch
          %573 = sbr.rel (%p571) target = $region104
        $region103: #{iris_forward_prepared.1} parent=99 // pred_region
          %s574 = sand.u32 %s136, 1
          %s575 = sand.u32 %s136, 1
          %s576 = smul.addr %s575, 32
          %s577 = scalar_lea.vmem [#allocation4], %s576
        $region104: #{iris_forward_prepared.1} parent=99 // pred_fallthru
          _
      $region100: #{iris_forward_prepared.1} parent=5 // pred_fallthru
        _
    $region6: #{iris_forward_prepared.1} parent=1 // loop_footer
      %s16 = sadd.s32 1, %s12
    $region7: #{iris_forward_prepared.1} parent=1 // loop_footer_branch
      %11 = sbr.rel target = $region3
    $region8: #{iris_forward_prepared.1} parent=1 // loop_exit
      _
    %578 = vsyncpa [#allocation3], 1
    %s579 = scalar_lea.sflag [#allocation3], 1
    %580 = vsyncpa %s579, 1

</llo_original>
